<compile_context>
chip_gen: v7x
topology: tpu7x:2x2x1
jax: 0.10.0
libtpu: 0.0.40
codegen_flags: <defaults>
</compile_context>

<pallas_src>
import math

import jax
import jax.numpy as jnp
from jax.experimental import pallas as pl
from jax.experimental.pallas import tpu as pltpu


def _sublane_multiple(dtype):
    itemsize = jnp.dtype(dtype).itemsize
    return max(8, 32 // itemsize)          # f32 -> 8, bf16 -> 16, int8/fp8 -> 32


def _device_budgets():
    """Per-generation (output block bytes, scoped VMEM limit)."""
    vmem_phys = 64 << 20                   # conservative default (v7x-sized)
    try:
        info = pltpu.get_tpu_info()
        vmem_phys = int(getattr(info, "vmem_capacity_bytes", vmem_phys))
    except Exception:
        pass
    if vmem_phys >= (96 << 20):            # v5e / v6e: 128 MiB physical VMEM
        return 12 << 20, 80 << 20
    return 6 << 20, 48 << 20               # v7x: 64 MiB physical VMEM


def _make_all_mixup_kernel(K, C):
    """Kernel over a (tn, K*C) output block.

    K == 1 : single lane-splat compare of the (tn, 1) target column.
    K >= 2 : one MXU matmul against the constant (K, K*C) group-selector M
             (M[g, l] = 1 iff l // C == g) expands the (tn, K) packed targets
             to per-lane targets, then a single compare + cast -> O(1) VALU
             ops per output element regardless of K.
    """
    KC = K * C

    if K == 1:
        def kernel(tgt_ref, out_ref):
            lane = jax.lax.broadcasted_iota(jnp.int32, (1, KC), 1).astype(jnp.float32)
            out_ref[...] = (tgt_ref[...] == lane).astype(out_ref.dtype)
    else:
        def kernel(tgt_ref, m_ref, out_ref):
            lane = jax.lax.broadcasted_iota(jnp.int32, (1, KC), 1).astype(jnp.float32)
            # t[r, l] = tgt[r, l // C]  (exact: integer-valued f32 operands).
            t = jnp.dot(tgt_ref[...], m_ref[...], preferred_element_type=jnp.float32)
            out_ref[...] = (t == lane).astype(out_ref.dtype)

    return kernel


def all_mixup(obj_sem_cls_pred, obj_labels, cur_step=None, total_steps=None,
              target_block_bytes=None, vmem_limit_bytes=None):
    """JAX/Pallas equivalent of AllMixup.forward (cur_step/total_steps unused)."""
    B, N, C = obj_sem_cls_pred.shape
    out_dtype = obj_sem_cls_pred.dtype
    itemsize = jnp.dtype(out_dtype).itemsize
    labels = obj_labels.astype(jnp.int32)

    blk_bytes, vmem_lim = _device_budgets()
    if target_block_bytes is None:
        target_block_bytes = blk_bytes
    if vmem_limit_bytes is None:
        vmem_limit_bytes = vmem_lim

    # ---- lane-packing factor K: make the stored last dim a multiple of 128 ----
    if C % 128 == 0:
        K = 1                                    # already lane-dense
    else:
        K = 128 // math.gcd(C, 128)
        # Fast path needs the row-major flatten to tile evenly and the constant
        # selector matrix to stay small (it gets double-buffered in VMEM).
        if (B * N) % K != 0 or K * K * C * 4 > (4 << 20):
            K = 1                                # fallback: masked stores (C % 128 != 0)
    KC = K * C
    R = (B * N) // K                             # rows of the (R, K*C) out slab

    # Packed per-lane-group class targets, sublane-aligned: (R, K) f32.
    # target[r, g] = g*C + label  (or -1 for ignored labels).
    labels_r = labels.reshape(R, K)
    offs = (jnp.arange(K, dtype=jnp.int32) * C)[None, :]
    target = jnp.where(labels_r >= 0, labels_r + offs, jnp.int32(-1)).astype(jnp.float32)

    # ---- row tiling: generation-sized blocks, >= 2 grid steps when possible ----
    mult = _sublane_multiple(out_dtype)
    # Per-row VMEM footprint: output row + lane-padded (K -> 128) f32 target row.
    row_bytes = KC * itemsize + 128 * 4
    tn = (max(target_block_bytes // row_bytes, mult) // mult) * mult
    if R <= mult:
        tn = R                                   # tiny output: one full-extent block
    else:
        # Keep >= 2 grid steps: v7x megacore sharding + pipelined writeback.
        half = (R + 1) // 2
        half_rows = ((half + mult - 1) // mult) * mult
        tn = min(tn, half_rows)
    grid = (pl.cdiv(R, tn),)

    kernel = _make_all_mixup_kernel(K, C)
    in_specs = [pl.BlockSpec((tn, K), lambda i: (i, 0))]
    args = [target]
    flops = 0
    bytes_accessed = R * KC * itemsize + R * K * 4
    if K >= 2:
        # Constant group-selector matrix M[g, l] = 1{l // C == g}, f32 (K, KC).
        g_idx = jnp.arange(K, dtype=jnp.int32)[:, None]
        l_grp = jnp.arange(KC, dtype=jnp.int32)[None, :] // C
        m = (l_grp == g_idx).astype(jnp.float32)
        in_specs.append(pl.BlockSpec((K, KC), lambda i: (0, 0)))
        args.append(m)
        flops = 2 * R * K * KC
        bytes_accessed += K * KC * 4

    out2d = pl.pallas_call(
        kernel,
        out_shape=jax.ShapeDtypeStruct((R, KC), out_dtype),
        grid_spec=pltpu.PrefetchScalarGridSpec(
            num_scalar_prefetch=0,
            grid=grid,
            in_specs=in_specs,
            out_specs=pl.BlockSpec((tn, KC), lambda i: (i, 0)),
        ),
        compiler_params=pltpu.CompilerParams(
            dimension_semantics=("parallel",),
            vmem_limit_bytes=vmem_limit_bytes,
        ),
        cost_estimate=pl.CostEstimate(
            flops=flops, transcendentals=0, bytes_accessed=bytes_accessed),
    )(*args)

    # Free reshape: (R, K*C) and (B, N, C) share the same row-major layout.
    return out2d.reshape(B, N, C)


def _reference(obj_sem_cls_pred, obj_labels):
    """Pure-JAX reference mirroring the PyTorch double loop."""
    B, N, C = obj_sem_cls_pred.shape
    lab = obj_labels[:, :, None].astype(jnp.int32)
    cls_ids = jnp.arange(C, dtype=jnp.int32)[None, None, :]
    return jnp.where((cls_ids == lab) & (lab >= 0), 1.0, 0.0).astype(
        obj_sem_cls_pred.dtype
    )


if __name__ == "__main__":
    key = jax.random.PRNGKey(0)
    cur_step, total_steps = 10, 100  # unused, kept for signature parity

    cases = [
        (2, 8, 32),    # packable C: K=4 -> lane-dense 128-wide MXU path
        (2, 8, 20),    # (B*N) % K != 0 -> K=1 masked-store fallback, 2-step grid
        (2, 16, 128),  # C % 128 == 0 -> K=1 lane-dense splat path, 2-step grid
    ]
    for idx, (B, N, C) in enumerate(cases):
        k1, k2 = jax.random.split(jax.random.fold_in(key, idx))
        pred = jax.random.normal(k1, (B, N, C), dtype=jnp.float32)
        labels = jax.random.randint(k2, (B, N), minval=-1, maxval=C, dtype=jnp.int32)
        out = jax.block_until_ready(all_mixup(pred, labels, cur_step, total_steps))
        ref = _reference(pred, labels)
        assert out.shape == pred.shape and out.dtype == pred.dtype
        assert bool(jnp.array_equal(out, ref)), f"Pallas mismatch for case {(B, N, C)}"

    print("KERNEL_OK")
</pallas_src>

<mosaic_0001>
module attributes {stable_mosaic.version = 11 : i64} {
  func.func @kernel(%arg0: i32, %arg1: memref<4x4xf32, #tpu.memory_space<vmem>>, %arg2: memref<4x128xf32, #tpu.memory_space<vmem>>, %arg3: memref<4x128xf32, #tpu.memory_space<vmem>>) attributes {dimension_semantics = [#tpu.dimension_semantics<parallel>], iteration_bounds = array<i64: 1>, scalar_prefetch = 0 : i64, scratch_operands = 0 : i64, tpu.core_type = #tpu.core_type<tc>, window_params = [{transform_indices = @transform_0, window_bounds = array<i64: 4, 4>}, {pipeline_mode = #tpu.pipeline_mode<synchronous>, transform_indices = @transform_1, window_bounds = array<i64: 4, 128>}, {transform_indices = @transform_2, window_bounds = array<i64: 4, 128>}]} {
    %0 = tpu.iota {dimensions = array<i32: 1>} : vector<1x128xi32>
    %1 = arith.sitofp %0 : vector<1x128xi32> to vector<1x128xf32>
    %c0 = arith.constant 0 : index
    %c0_0 = arith.constant 0 : index
    %2 = vector.load %arg1[%c0, %c0_0] : memref<4x4xf32, #tpu.memory_space<vmem>>, vector<4x4xf32>
    %c0_1 = arith.constant 0 : index
    %c0_2 = arith.constant 0 : index
    %3 = vector.load %arg2[%c0_1, %c0_2] : memref<4x128xf32, #tpu.memory_space<vmem>>, vector<4x128xf32>
    %cst = arith.constant dense<0.000000e+00> : vector<4x128xf32>
    %4 = tpu.matmul %2, %3, %cst {dimension_numbers = #tpu.dot_dimension_numbers<[1], [0], [0], [1], [0, 0, 1, 1], [], []>} : vector<4x4xf32>, vector<4x128xf32>, vector<4x128xf32> -> vector<4x128xf32>
    %5 = vector.broadcast %1 : vector<1x128xf32> to vector<4x128xf32>
    %6 = arith.cmpf oeq, %4, %5 : vector<4x128xf32>
    %7 = arith.extui %6 : vector<4x128xi1> to vector<4x128xi32>
    %8 = arith.sitofp %7 : vector<4x128xi32> to vector<4x128xf32>
    %c0_3 = arith.constant 0 : index
    %c0_4 = arith.constant 0 : index
    %9 = vector.load %arg3[%c0_3, %c0_4] : memref<4x128xf32, #tpu.memory_space<vmem>>, vector<4x128xf32>
    tpu.vector_store %arg3[%c0_3, %c0_4], %8 {strides = array<i32>} : memref<4x128xf32, #tpu.memory_space<vmem>>, vector<4x128xf32>,
    return
  }
  func.func @transform_0(%arg0: i32) -> (i32, i32) {
    %c0_i32 = arith.constant 0 : i32
    %c0_i32_0 = arith.constant 0 : i32
    return %arg0, %c0_i32 : i32, i32
  }
  func.func @transform_1(%arg0: i32) -> (i32, i32) {
    %c0_i32 = arith.constant 0 : i32
    %c0_i32_0 = arith.constant 0 : i32
    %c0_i32_1 = arith.constant 0 : i32
    return %c0_i32, %c0_i32_0 : i32, i32
  }
  func.func @transform_2(%arg0: i32) -> (i32, i32) {
    %c0_i32 = arith.constant 0 : i32
    %c0_i32_0 = arith.constant 0 : i32
    return %arg0, %c0_i32 : i32, i32
  }
}

</mosaic_0001>

<llo_original>
// kernel: tpu_custom_call.1
$region0: #{tpu_custom_call.1}
  #allocation0 [shape = 'u32[]', space=smem, size = 0x4, offset = 0x4, fixed_abs, tag = 'smem constant byte address 0x4 - core index']
  #allocation1 [shape = 'u32[144,128]{1,0:T(1,128)}', space=vmem, size = 0x12000, scoped, tag = 'internal scratch']
  %s0 = inlined_call_operand.hbm [shape: f32[4,4], index: 0, kind: input, shape index: {}]
  %s1 = inlined_call_operand.hbm [shape: f32[4,128], index: 1, kind: input, shape index: {}]
  %s2 = inlined_call_operand.hbm [shape: f32[4,128], index: 2, kind: output, shape index: {}]
  %s3 = sld [smem:[#allocation0]]
  $region26: #{tpu_custom_call.1} parent=0
    _
  %s5 = ssub.s32 1, %s3
  %s6 = scalar_select 0, %s5, %s3
  $region1: #{tpu_custom_call.1} parent=0
    #allocation2 [shape = 'u8[2048]{0}', space=vmem, size = 0x800, scoped, tag = 'input window, operand 0, single buffered']
    #allocation3 [shape = 's32[1]{0}', space=sflag, size = 0x4, scoped, tag = 'scoped memory for tpu_custom_call.1']
    #allocation4 [shape = 's32[1]{0}', space=sflag, size = 0x4, scoped, tag = 'scoped memory for tpu_custom_call.1']
    #allocation5 [shape = 'u8[2048]{0}', space=vmem, size = 0x800, scoped, tag = 'input window, operand 1, single buffered']
    #allocation6 [shape = 's32[1]{0}', space=sflag, size = 0x4, scoped, tag = 'scoped memory for tpu_custom_call.1']
    #allocation7 [shape = 'u8[2048]{0}', space=vmem, size = 0x800, scoped, tag = 'output window, operand 0, single buffered']
    %7 = vsyncpa [#allocation3], 0
    %8 = vsyncpa [#allocation6], 0
    %9 = vsyncpa [#allocation4], 0
    // Predicated region
    $region2: #{tpu_custom_call.1} parent=1 // pred_check
      _
    $region3: #{tpu_custom_call.1} parent=1 // pred_check_branch
      %11 = sbr.rel (0) target = $region5
    $region4: #{tpu_custom_call.1} parent=1 // pred_region
      %s13 = ssub.s32 64, 64
      %14 = vsyncadd [#allocation3], %s13
      %s16 = sshll.u32 [#allocation2], 4
      %s17 = int_to_ptr.vmem [resolvable:$true] %s16
      %19 = dma.hbm_to_vmem [thread:$0]  %s0, 64, %s17, [#allocation3]
    $region5: #{tpu_custom_call.1} parent=1 // pred_fallthru
      _
    // Predicated region
    $region6: #{tpu_custom_call.1} parent=1 // pred_check
      _
    $region7: #{tpu_custom_call.1} parent=1 // pred_check_branch
      %21 = sbr.rel (0) target = $region9
    $region8: #{tpu_custom_call.1} parent=1 // pred_region
      %s23 = ssub.s32 64, 64
      %24 = vsyncadd [#allocation6], %s23
      %s26 = sshll.u32 [#allocation5], 4
      %s27 = int_to_ptr.vmem [resolvable:$true] %s26
      %29 = dma.hbm_to_vmem [thread:$0]  %s1, 64, %s27, [#allocation6]
    $region9: #{tpu_custom_call.1} parent=1 // pred_fallthru
      _
    // Predicated region
    $region10: #{tpu_custom_call.1} parent=1 // pred_check
      _
    $region11: #{tpu_custom_call.1} parent=1 // pred_check_branch
      %31 = sbr.rel (0) target = $region13
    $region12: #{tpu_custom_call.1} parent=1 // pred_region
      %32 = dma.done [#allocation3], 64
    $region13: #{tpu_custom_call.1} parent=1 // pred_fallthru
      _
    // Predicated region
    $region14: #{tpu_custom_call.1} parent=1 // pred_check
      _
    $region15: #{tpu_custom_call.1} parent=1 // pred_check_branch
      %34 = sbr.rel (0) target = $region17
    $region16: #{tpu_custom_call.1} parent=1 // pred_region
      %35 = dma.done [#allocation6], 64
    $region17: #{tpu_custom_call.1} parent=1 // pred_fallthru
      _
    %v36 = vlaneseq
    %v37 = vand.u32 %v36, 127
    %v38 = vcvt.s32.f32 %v37
    %v39 = vld [vmem:[#allocation2] sm:$0xf]
    %v40 = vld [vmem:[#allocation5] sm:$0xf]
    %vm41 = vcmask 31744
    %v43 = vsel %vm41, %v39, 0
    %vm45 = vcmask 1043456
    %v47 = vsel %vm45, %v40, 0
    %49 = vmatprep.subr.mxu0 0.0
    %50 = vmatpush1.msra.mxu0 %v47
    %51 = vmatprep.subr.mxu0 0.0
    %52 = vmatpush1.msra.mxu0 0.0
    %53 = vmatprep.subr.mxu0 0.0
    %54 = vmatpush1.msra.mxu0 0.0
    %55 = vmatprep.subr.mxu0 0.0
    %56 = vmatpush1.msra.mxu0 0.0
    %57 = vmatprep.subr.mxu0 0.0
    %58 = vmatpush1.msra.mxu0 0.0
    %59 = vmatprep.subr.mxu0 0.0
    %60 = vmatpush1.msra.mxu0 0.0
    %61 = vmatprep.subr.mxu0 0.0
    %62 = vmatpush1.msra.mxu0 0.0
    %63 = vmatprep.subr.mxu0 0.0
    %64 = vmatpush1.msra.mxu0 0.0
    %65 = vmatprep.subr.mxu0 0.0
    %66 = vmatpush1.msra.mxu0 0.0
    %67 = vmatprep.subr.mxu0 0.0
    %68 = vmatpush1.msra.mxu0 0.0
    %69 = vmatprep.subr.mxu0 0.0
    %70 = vmatpush1.msra.mxu0 0.0
    %71 = vmatprep.subr.mxu0 0.0
    %72 = vmatpush1.msra.mxu0 0.0
    %73 = vmatprep.subr.mxu0 0.0
    %74 = vmatpush1.msra.mxu0 0.0
    %75 = vmatprep.subr.mxu0 0.0
    %76 = vmatpush1.msra.mxu0 0.0
    %77 = vmatprep.subr.mxu0 0.0
    %78 = vmatpush1.msra.mxu0 0.0
    %79 = vmatprep.subr.mxu0 0.0
    %80 = vmatpush1.msra.mxu0 0.0
    %81 = vmatprep.subr.mxu0 0.0
    %82 = vmatpush1.msra.mxu0 0.0
    %83 = vmatprep.subr.mxu0 0.0
    %84 = vmatpush1.msra.mxu0 0.0
    %85 = vmatprep.subr.mxu0 0.0
    %86 = vmatpush1.msra.mxu0 0.0
    %87 = vmatprep.subr.mxu0 0.0
    %88 = vmatpush1.msra.mxu0 0.0
    %89 = vmatprep.subr.mxu0 0.0
    %90 = vmatpush1.msra.mxu0 0.0
    %91 = vmatprep.subr.mxu0 0.0
    %92 = vmatpush1.msra.mxu0 0.0
    %93 = vmatprep.subr.mxu0 0.0
    %94 = vmatpush1.msra.mxu0 0.0
    %95 = vmatprep.subr.mxu0 0.0
    %96 = vmatpush1.msra.mxu0 0.0
    %97 = vmatprep.subr.mxu0 0.0
    %98 = vmatpush1.msra.mxu0 0.0
    %99 = vmatprep.subr.mxu0 0.0
    %100 = vmatpush1.msra.mxu0 0.0
    %101 = vmatprep.subr.mxu0 0.0
    %102 = vmatpush1.msra.mxu0 0.0
    %103 = vmatprep.subr.mxu0 0.0
    %104 = vmatpush1.msra.mxu0 0.0
    %105 = vmatprep.subr.mxu0 0.0
    %106 = vmatpush1.msra.mxu0 0.0
    %107 = vmatprep.subr.mxu0 0.0
    %108 = vmatpush1.msra.mxu0 0.0
    %109 = vmatprep.subr.mxu0 0.0
    %110 = vmatpush1.msra.mxu0 0.0
    %111 = vmatprep.subr.mxu0 0.0
    %112 = vmatpush1.msra.mxu0 0.0
    %113 = vmatprep.mubr.f32.mxu0 0.0
    %114 = vmatmul.mubr.f32.gmra.mrb[0].mxu0 %v43
    %v115 = vpop.f32.mrb[0].mxu0
    %v116 = vadd.f32 0.0, %v115
    %v117 = vpop.f32.mrb[0].mxu0
    %118 = vdwg.mxu0
    %vm119 = vcmp.eq.f32.partialorder %v116, %v38
    %v120 = vsel %vm119, 1, 0
    %v121 = vcvt.s32.f32 %v120
    %122 = vst [vmem:[#allocation7] sm:$0xf] %v121
    // Predicated region
    $region18: #{tpu_custom_call.1} parent=1 // pred_check
      _
    $region19: #{tpu_custom_call.1} parent=1 // pred_check_branch
      %124 = sbr.rel (0) target = $region21
    $region20: #{tpu_custom_call.1} parent=1 // pred_region
      %s126 = ssub.s32 64, 64
      %127 = vsyncadd [#allocation4], %s126
      %s129 = sshll.u32 [#allocation7], 4
      %s130 = int_to_ptr.vmem [resolvable:$true] %s129
      %132 = dma.vmem_to_hbm [thread:$0]  %s130, 64, %s2, [#allocation4]
    $region21: #{tpu_custom_call.1} parent=1 // pred_fallthru
      _
    // Predicated region
    $region22: #{tpu_custom_call.1} parent=1 // pred_check
      _
    $region23: #{tpu_custom_call.1} parent=1 // pred_check_branch
      %134 = sbr.rel (0) target = $region25
    $region24: #{tpu_custom_call.1} parent=1 // pred_region
      %135 = dma.done [#allocation4], 64
    $region25: #{tpu_custom_call.1} parent=1 // pred_fallthru
      _
    %136 = vsyncpa [#allocation3], 1
    %137 = vsyncpa [#allocation6], 1
    %138 = vsyncpa [#allocation4], 1

</llo_original>
